<compile_context>
chip_gen: v7x
topology: tpu7x:2x2x1
jax: 0.10.0
libtpu: 0.0.40
codegen_flags: <defaults>
</compile_context>

<pallas_src>
import functools
import math

import jax
import jax.numpy as jnp
from jax.experimental import pallas as pl
from jax.experimental.pallas import tpu as pltpu


def _bahdanau_attention_kernel(ent_ref, ctx_ref, w1_ref, w2_ref, b12_ref, v_ref,
                               bv_ref, vec_ref, wts_ref, *, n_tokens):
    bblk, Tp, F = ctx_ref.shape
    D = w1_ref.shape[1]

    ctx = ctx_ref[...]                                    # (bblk, Tp, F), f32 or bf16

    # W1(contexts): one (bblk*Tp, F) @ (F, D) MXU matmul, f32 accumulation.
    # Tp is a multiple of 8, so the reshape is a relayout-free re-view.
    rc = jnp.dot(ctx.reshape(bblk * Tp, F), w1_ref[...],
                 preferred_element_type=jnp.float32).reshape(bblk, Tp, D)

    # W2(entities) + folded (b1 + b2).
    if ent_ref.ndim == 2:                                 # decoder-state attention (Te == 1)
        re = jnp.dot(ent_ref[...], w2_ref[...],
                     preferred_element_type=jnp.float32)  # (bblk, D)
        re = re[:, None, :] + b12_ref[...]                # (bblk, 1, D)
    else:                                                 # self-attention (Te == T)
        re = jnp.dot(ent_ref[...].reshape(bblk * Tp, F), w2_ref[...],
                     preferred_element_type=jnp.float32).reshape(bblk, Tp, D)
        re = re + b12_ref[...]                            # (bblk, Tp, D)

    s = jnp.tanh(rc + re)                                 # (bblk, Tp, D), EUP

    # V projection: VPU multiply + XLU lane reduce (keepdims keeps tokens on the
    # sublane axis so the softmax weights broadcast against ctx w/o a relayout).
    score = jnp.sum(s * v_ref[...], axis=-1, keepdims=True) + bv_ref[...]   # (bblk, Tp, 1)

    if n_tokens != Tp:
        # Ragged T was padded to a sublane multiple in the wrapper; mask the
        # padded tokens out of the softmax (compile-time-known pattern).
        tok = jax.lax.broadcasted_iota(jnp.int32, (Tp, 1), 0)
        score = jnp.where(tok < n_tokens, score, -1e30)

    # Softmax over the token (sublane) axis.
    m = jnp.max(score, axis=1, keepdims=True)             # (bblk, 1, 1)
    e = jnp.exp(score - m)
    denom = jnp.sum(e, axis=1, keepdims=True)
    r = pl.reciprocal(denom, approx=True)                 # EUP fast path
    r = r * (2.0 - denom * r)                             # one Newton step (free VPU slack)
    w = e * r                                             # (bblk, Tp, 1)

    wts_ref[...] = w                                      # already in (B, T, 1) layout

    # att_vectors = sum_t contexts * att_weights: VPU multiply + sublane reduce.
    # (T is already on sublanes for both operands -> no relayout.)
    vec_ref[...] = jnp.sum(ctx.astype(jnp.float32) * w, axis=1)             # (bblk, F)


def _round_up(x, m):
    return (x + m - 1) // m * m


def _vmem_budget_bytes():
    """75% of the chip's VMEM (v7x: 48 of 64 MiB) leaves headroom for Mosaic
    internal scratch; conservative 64 MiB fallback if the query fails."""
    try:
        cap = int(pltpu.get_tpu_info().vmem_capacity_bytes)
    except Exception:
        cap = 64 * 1024 * 1024
    return cap * 3 // 4


def _vmem_bytes_estimate(bblk, Tp, te_rows, F, D, in_bytes):
    """Per-step VMEM estimate: double-buffered activation blocks, (conservatively
    double-buffered) weights, and the f32 intermediates including the implicit
    f32 copy of the contexts block and the ctx*w product."""
    act_in = 2 * bblk * (Tp + te_rows) * F * in_bytes                 # entities + contexts
    act_out = 2 * bblk * (F + Tp) * 4                                 # att_vectors + att_weights
    weights = 2 * (2 * F * D * in_bytes + (2 * D + 1) * 4)            # W1^T, W2^T, b12, v, bv
    interm = 4 * (3 * bblk * Tp * D + bblk * te_rows * D              # rc, rc+re, tanh, re
                  + 2 * bblk * Tp * F                                 # f32 ctx copy + ctx*w
                  + 8 * bblk * Tp)                                    # score/exp/softmax temps
    return act_in + act_out + weights + interm


def _pick_batch_block(B, Tp, te_rows, F, D, in_bytes, budget):
    """~2048 projection rows (bblk*Tp) per grid step, bblk a multiple of 8,
    >= 2 grid steps when B > 8, best-effort 256-aligned M, sized to fit VMEM."""
    if B <= 8:
        # TODO(synk): a single grid step leaves one v7x TensorCore idle for tiny
        # batches; a second grid axis would need a two-pass/online softmax.
        return B
    cap = max(8, ((B - 1) // 8) * 8)                 # keep >= 2 grid steps
    bblk = min(max(8, (2048 // max(Tp, 1)) // 8 * 8), cap)
    # Best effort: make bblk*Tp a multiple of 256 (full v6e/v7x MXU passes;
    # automatically a multiple of 128 for v5e as well).
    if (bblk * Tp) % 256 != 0:
        step = 256 // math.gcd(Tp, 256)
        aligned = (bblk // step) * step
        if 8 <= aligned <= cap:
            bblk = aligned
    # Shrink until the estimate (with 1.5x margin) fits the VMEM budget.
    while bblk > 8 and 3 * _vmem_bytes_estimate(bblk, Tp, te_rows, F, D, in_bytes) // 2 > budget:
        bblk -= 8
    return bblk


def prepare_params(params, compute_dtype=jnp.float32):
    """One-time parameter prep (hoist out of the per-call path): transpose to
    (in, out), fold b1 + b2, cast the MXU operands to compute_dtype.
    compute_dtype=jnp.bfloat16 is a good choice on v5e/v6e/v7x (the MXU is
    natively bf16 everywhere); accumulation and post-matmul math stay f32."""
    D, F = params["w1"].shape
    return {
        "w1_t": params["w1"].T.astype(compute_dtype),                     # (F, D)
        "w2_t": params["w2"].T.astype(compute_dtype),                     # (F, D)
        "b12": (params["b1"] + params["b2"]).reshape(1, D).astype(jnp.float32),
        "v": params["v"].reshape(1, D).astype(jnp.float32),
        "bv": params["bv"].reshape(1, 1).astype(jnp.float32),
    }


def attention_component_forward(entities, contexts, params=None, *, prepared=None,
                                compute_dtype=jnp.float32):
    """Bahdanau attention forward. Returns (att_vectors (B,F), att_weights (B,T,1)).

    Pass `prepared=prepare_params(params, dtype)` to hoist parameter prep out of
    repeated calls. Note: with bf16 compute the weighted sum uses bf16-rounded
    contexts (~1e-2 level input rounding relative to an f32 reference)."""
    B, Te, F = entities.shape
    Bc, T, Fc = contexts.shape
    assert B == Bc and F == Fc
    assert Te == 1 or Te == T

    if prepared is None:
        prepared = prepare_params(params, compute_dtype)
    w1_t, w2_t = prepared["w1_t"], prepared["w2_t"]
    b12, v, bv = prepared["b12"], prepared["v"], prepared["bv"]
    in_dtype = w1_t.dtype
    in_bytes = jnp.dtype(in_dtype).itemsize
    D = w1_t.shape[1]
    assert w1_t.shape[0] == F

    # Pad the token axis to a sublane multiple only if ragged (keeps the
    # in-kernel (bblk*T, F) reshape relayout-free); padded tokens are masked.
    Tp = _round_up(T, 8)
    ctx = contexts.astype(in_dtype)
    ent = entities.astype(in_dtype)
    if Tp != T:
        ctx = jnp.pad(ctx, ((0, 0), (0, Tp - T), (0, 0)))
        if Te == T:
            ent = jnp.pad(ent, ((0, 0), (0, Tp - T), (0, 0)))
    if Te == 1:
        ent = ent.reshape(B, F)          # free squeeze -> packed (bblk, F) blocks
    te_rows = 1 if Te == 1 else Tp

    budget = _vmem_budget_bytes()
    bblk = _pick_batch_block(B, Tp, te_rows, F, D, in_bytes, budget)
    grid = (pl.cdiv(B, bblk),)           # edge block may be partial; no batch padding

    if Te == 1:
        ent_spec = pl.BlockSpec((bblk, F), lambda i: (i, 0))
    else:
        ent_spec = pl.BlockSpec((bblk, Tp, F), lambda i: (i, 0, 0))
    ctx_spec = pl.BlockSpec((bblk, Tp, F), lambda i: (i, 0, 0))
    vec_spec = pl.BlockSpec((bblk, F), lambda i: (i, 0))
    wts_spec = pl.BlockSpec((bblk, Tp, 1), lambda i: (i, 0, 0))

    def _invariant_spec(shape, single_buffer):
        nd = len(shape)
        index_map = lambda i: (0,) * nd
        if single_buffer and hasattr(pl, "Buffered"):
            # Grid-invariant operands: fetched once, so single-buffer them to
            # halve their VMEM footprint.
            return pl.BlockSpec(shape, index_map,
                                pipeline_mode=pl.Buffered(buffer_count=1))
        return pl.BlockSpec(shape, index_map)

    def _call(single_buffer_weights):
        win = lambda shape: _invariant_spec(shape, single_buffer_weights)
        return pl.pallas_call(
            functools.partial(_bahdanau_attention_kernel, n_tokens=T),
            out_shape=(
                jax.ShapeDtypeStruct((B, F), jnp.float32),     # att_vectors (lane-dense)
                jax.ShapeDtypeStruct((B, Tp, 1), jnp.float32), # att_weights (PyTorch layout)
            ),
            grid_spec=pltpu.PrefetchScalarGridSpec(
                num_scalar_prefetch=0,
                grid=grid,
                in_specs=[
                    ent_spec,                 # entities
                    ctx_spec,                 # contexts
                    win((F, D)),              # W1^T (grid-invariant)
                    win((F, D)),              # W2^T (grid-invariant)
                    win((1, D)),              # b1 + b2
                    win((1, D)),              # V row
                    win((1, 1)),              # bV
                ],
                out_specs=[vec_spec, wts_spec],
            ),
            compiler_params=pltpu.CompilerParams(
                dimension_semantics=("parallel",),    # megacore sharding (v7x: 2 TCs)
                vmem_limit_bytes=budget,
            ),
        )(ent, ctx, w1_t, w2_t, b12, v, bv)

    try:
        vec, wts = _call(single_buffer_weights=True)
    except Exception:
        # Installed Pallas does not support pipeline_mode on this path: fall
        # back to default double-buffered weight blocks (correctness identical).
        vec, wts = _call(single_buffer_weights=False)

    att_weights = wts if Tp == T else wts[:, :T, :]
    return vec, att_weights


def init_params(key, input_dim, dec_units):
    """Deterministic init matching nn.Linear shapes: W1,W2: (dec,in); V: (1,dec)."""
    k1, k2, k3, k4, k5, k6 = jax.random.split(key, 6)
    lim1 = 1.0 / jnp.sqrt(input_dim)
    limv = 1.0 / jnp.sqrt(dec_units)
    return {
        "w1": jax.random.uniform(k1, (dec_units, input_dim), jnp.float32, -lim1, lim1),
        "b1": jax.random.uniform(k2, (dec_units,), jnp.float32, -lim1, lim1),
        "w2": jax.random.uniform(k3, (dec_units, input_dim), jnp.float32, -lim1, lim1),
        "b2": jax.random.uniform(k4, (dec_units,), jnp.float32, -lim1, lim1),
        "v":  jax.random.uniform(k5, (1, dec_units), jnp.float32, -limv, limv),
        "bv": jax.random.uniform(k6, (1,), jnp.float32, -limv, limv),
    }


def reference_forward(entities, contexts, params):
    """Pure-JAX reference mirroring the PyTorch module (for sanity checking)."""
    rc = contexts @ params["w1"].T + params["b1"]
    re = entities @ params["w2"].T + params["b2"]
    score = jnp.tanh(rc + re) @ params["v"].T + params["bv"]      # (B, T, 1)
    w = jax.nn.softmax(score, axis=1)
    vec = jnp.sum(contexts * w, axis=1)
    return vec, w


if __name__ == "__main__":
    key = jax.random.PRNGKey(0)
    kp, ke, kc, kp2, ke2, kc2, ke3, kc3 = jax.random.split(key, 8)

    # ---- Test 1: decoder-state attention (Te == 1), f32, hoisted param prep ----
    B, T, F, D = 2, 8, 32, 16
    params = init_params(kp, input_dim=F, dec_units=D)
    entities = jax.random.normal(ke, (B, 1, F), jnp.float32)
    contexts = jax.random.normal(kc, (B, T, F), jnp.float32)
    prepared = prepare_params(params)                        # once, not per call
    vec, wts = attention_component_forward(entities, contexts, prepared=prepared)
    jax.block_until_ready((vec, wts))
    ref_vec, ref_wts = reference_forward(entities, contexts, params)
    assert vec.shape == (B, F) and wts.shape == (B, T, 1)
    assert jnp.allclose(vec, ref_vec, atol=1e-4, rtol=1e-4)
    assert jnp.allclose(wts, ref_wts, atol=1e-4, rtol=1e-4)

    # ---- Test 2: self-attention (Te == T), multi-step grid with a partial edge
    #      batch block (B=20, bblk=16), bf16 MXU inputs, f32 accumulation. ----
    B2, T2, F2, D2 = 20, 8, 32, 16
    params2 = init_params(kp2, input_dim=F2, dec_units=D2)
    entities2 = jax.random.normal(ke2, (B2, T2, F2), jnp.float32)
    contexts2 = jax.random.normal(kc2, (B2, T2, F2), jnp.float32)
    prepared2 = prepare_params(params2, compute_dtype=jnp.bfloat16)
    vec2, wts2 = attention_component_forward(entities2, contexts2, prepared=prepared2)
    jax.block_until_ready((vec2, wts2))
    ref_vec2, ref_wts2 = reference_forward(entities2, contexts2, params2)
    assert vec2.shape == (B2, F2) and wts2.shape == (B2, T2, 1)
    assert jnp.allclose(vec2, ref_vec2, atol=5e-2, rtol=5e-2)
    assert jnp.allclose(wts2, ref_wts2, atol=5e-2, rtol=5e-2)

    # ---- Test 3: ragged token count (T=6 -> padded to 8 with score masking). ----
    B3, T3 = 2, 6
    entities3 = jax.random.normal(ke3, (B3, 1, F), jnp.float32)
    contexts3 = jax.random.normal(kc3, (B3, T3, F), jnp.float32)
    vec3, wts3 = attention_component_forward(entities3, contexts3, params)
    jax.block_until_ready((vec3, wts3))
    ref_vec3, ref_wts3 = reference_forward(entities3, contexts3, params)
    assert vec3.shape == (B3, F) and wts3.shape == (B3, T3, 1)
    assert jnp.allclose(vec3, ref_vec3, atol=1e-4, rtol=1e-4)
    assert jnp.allclose(wts3, ref_wts3, atol=1e-4, rtol=1e-4)

    print("KERNEL_OK")
</pallas_src>

<mosaic_0001>
module attributes {stable_mosaic.version = 11 : i64} {
  func.func @_bahdanau_attention_kernel(%arg0: i32, %arg1: memref<2x32xf32, #tpu.memory_space<vmem>>, %arg2: memref<2x8x32xf32, #tpu.memory_space<vmem>>, %arg3: memref<32x16xf32, #tpu.memory_space<vmem>>, %arg4: memref<32x16xf32, #tpu.memory_space<vmem>>, %arg5: memref<1x16xf32, #tpu.memory_space<vmem>>, %arg6: memref<1x16xf32, #tpu.memory_space<vmem>>, %arg7: memref<1x1xf32, #tpu.memory_space<vmem>>, %arg8: memref<2x32xf32, #tpu.memory_space<vmem>>, %arg9: memref<2x8x1xf32, #tpu.memory_space<vmem>>) attributes {dimension_semantics = [#tpu.dimension_semantics<parallel>], iteration_bounds = array<i64: 1>, scalar_prefetch = 0 : i64, scratch_operands = 0 : i64, tpu.core_type = #tpu.core_type<tc>, window_params = [{transform_indices = @transform_0, window_bounds = array<i64: 2, 32>}, {transform_indices = @transform_1, window_bounds = array<i64: 2, 8, 32>}, {pipeline_mode = #tpu.pipeline_mode<synchronous>, transform_indices = @transform_2, window_bounds = array<i64: 32, 16>}, {pipeline_mode = #tpu.pipeline_mode<synchronous>, transform_indices = @transform_3, window_bounds = array<i64: 32, 16>}, {pipeline_mode = #tpu.pipeline_mode<synchronous>, transform_indices = @transform_4, window_bounds = array<i64: 1, 16>}, {pipeline_mode = #tpu.pipeline_mode<synchronous>, transform_indices = @transform_5, window_bounds = array<i64: 1, 16>}, {pipeline_mode = #tpu.pipeline_mode<synchronous>, transform_indices = @transform_6, window_bounds = array<i64: 1, 1>}, {transform_indices = @transform_7, window_bounds = array<i64: 2, 32>}, {transform_indices = @transform_8, window_bounds = array<i64: 2, 8, 1>}]} {
    %c0 = arith.constant 0 : index
    %c0_0 = arith.constant 0 : index
    %c0_1 = arith.constant 0 : index
    %0 = vector.load %arg2[%c0, %c0_0, %c0_1] : memref<2x8x32xf32, #tpu.memory_space<vmem>>, vector<2x8x32xf32>
    %1 = vector.shape_cast %0 : vector<2x8x32xf32> to vector<16x32xf32>
    %c0_2 = arith.constant 0 : index
    %c0_3 = arith.constant 0 : index
    %2 = vector.load %arg3[%c0_2, %c0_3] : memref<32x16xf32, #tpu.memory_space<vmem>>, vector<32x16xf32>
    %cst = arith.constant dense<0.000000e+00> : vector<16x16xf32>
    %3 = tpu.matmul %1, %2, %cst {dimension_numbers = #tpu.dot_dimension_numbers<[1], [0], [0], [1], [0, 0, 1, 1], [], []>} : vector<16x32xf32>, vector<32x16xf32>, vector<16x16xf32> -> vector<16x16xf32>
    %4 = vector.shape_cast %3 : vector<16x16xf32> to vector<2x8x16xf32>
    %c0_4 = arith.constant 0 : index
    %c0_5 = arith.constant 0 : index
    %5 = vector.load %arg1[%c0_4, %c0_5] : memref<2x32xf32, #tpu.memory_space<vmem>>, vector<2x32xf32>
    %c0_6 = arith.constant 0 : index
    %c0_7 = arith.constant 0 : index
    %6 = vector.load %arg4[%c0_6, %c0_7] : memref<32x16xf32, #tpu.memory_space<vmem>>, vector<32x16xf32>
    %cst_8 = arith.constant dense<0.000000e+00> : vector<2x16xf32>
    %7 = tpu.matmul %5, %6, %cst_8 {dimension_numbers = #tpu.dot_dimension_numbers<[1], [0], [0], [1], [0, 0, 1, 1], [], []>} : vector<2x32xf32>, vector<32x16xf32>, vector<2x16xf32> -> vector<2x16xf32>
    %8 = vector.shape_cast %7 : vector<2x16xf32> to vector<2x1x16xf32>
    %c0_9 = arith.constant 0 : index
    %c0_10 = arith.constant 0 : index
    %9 = vector.load %arg5[%c0_9, %c0_10] : memref<1x16xf32, #tpu.memory_space<vmem>>, vector<1x16xf32>
    %10 = vector.shape_cast %9 : vector<1x16xf32> to vector<1x1x16xf32>
    %11 = vector.broadcast %10 : vector<1x1x16xf32> to vector<2x1x16xf32>
    %12 = arith.addf %8, %11 : vector<2x1x16xf32>
    %13 = vector.broadcast %12 : vector<2x1x16xf32> to vector<2x8x16xf32>
    %14 = arith.addf %4, %13 : vector<2x8x16xf32>
    %15 = math.tanh %14 : vector<2x8x16xf32>
    %c0_11 = arith.constant 0 : index
    %c0_12 = arith.constant 0 : index
    %16 = vector.load %arg6[%c0_11, %c0_12] : memref<1x16xf32, #tpu.memory_space<vmem>>, vector<1x16xf32>
    %17 = vector.shape_cast %16 : vector<1x16xf32> to vector<1x1x16xf32>
    %18 = vector.broadcast %17 : vector<1x1x16xf32> to vector<2x8x16xf32>
    %19 = arith.mulf %15, %18 : vector<2x8x16xf32>
    %cst_13 = arith.constant dense<0.000000e+00> : vector<2x8xf32>
    %20 = vector.multi_reduction <add>, %19, %cst_13 [2] : vector<2x8x16xf32> to vector<2x8xf32>
    %21 = vector.shape_cast %20 : vector<2x8xf32> to vector<2x8x1xf32>
    %c0_14 = arith.constant 0 : index
    %c0_15 = arith.constant 0 : index
    %22 = vector.load %arg7[%c0_14, %c0_15] : memref<1x1xf32, #tpu.memory_space<vmem>>, vector<1x1xf32>
    %23 = vector.shape_cast %22 : vector<1x1xf32> to vector<1x1x1xf32>
    %24 = vector.broadcast %23 : vector<1x1x1xf32> to vector<2x8x1xf32>
    %25 = arith.addf %21, %24 : vector<2x8x1xf32>
    %cst_16 = arith.constant dense<0xFF800000> : vector<2x1xf32>
    %26 = vector.multi_reduction <maximumf>, %25, %cst_16 [1] : vector<2x8x1xf32> to vector<2x1xf32>
    %27 = vector.shape_cast %26 : vector<2x1xf32> to vector<2x1x1xf32>
    %28 = vector.broadcast %27 : vector<2x1x1xf32> to vector<2x8x1xf32>
    %29 = arith.subf %25, %28 : vector<2x8x1xf32>
    %30 = math.exp %29 : vector<2x8x1xf32>
    %cst_17 = arith.constant dense<0.000000e+00> : vector<2x1xf32>
    %31 = vector.multi_reduction <add>, %30, %cst_17 [1] : vector<2x8x1xf32> to vector<2x1xf32>
    %32 = vector.shape_cast %31 : vector<2x1xf32> to vector<2x1x1xf32>
    %33 = tpu.reciprocal %32 {approx = true} : vector<2x1x1xf32> -> vector<2x1x1xf32>
    %34 = arith.mulf %32, %33 : vector<2x1x1xf32>
    %cst_18 = arith.constant 2.000000e+00 : f32
    %35 = vector.broadcast %cst_18 : f32 to vector<2x1x1xf32>
    %36 = arith.subf %35, %34 : vector<2x1x1xf32>
    %37 = arith.mulf %33, %36 : vector<2x1x1xf32>
    %38 = vector.broadcast %37 : vector<2x1x1xf32> to vector<2x8x1xf32>
    %39 = arith.mulf %30, %38 : vector<2x8x1xf32>
    %c0_19 = arith.constant 0 : index
    %c0_20 = arith.constant 0 : index
    %c0_21 = arith.constant 0 : index
    %40 = vector.load %arg9[%c0_19, %c0_20, %c0_21] : memref<2x8x1xf32, #tpu.memory_space<vmem>>, vector<2x8x1xf32>
    tpu.vector_store %arg9[%c0_19, %c0_20, %c0_21], %39 {strides = array<i32>} : memref<2x8x1xf32, #tpu.memory_space<vmem>>, vector<2x8x1xf32>,
    %41 = vector.broadcast %39 : vector<2x8x1xf32> to vector<2x8x32xf32>
    %42 = arith.mulf %0, %41 : vector<2x8x32xf32>
    %cst_22 = arith.constant dense<0.000000e+00> : vector<2x32xf32>
    %43 = vector.multi_reduction <add>, %42, %cst_22 [1] : vector<2x8x32xf32> to vector<2x32xf32>
    %c0_23 = arith.constant 0 : index
    %c0_24 = arith.constant 0 : index
    %44 = vector.load %arg8[%c0_23, %c0_24] : memref<2x32xf32, #tpu.memory_space<vmem>>, vector<2x32xf32>
    tpu.vector_store %arg8[%c0_23, %c0_24], %43 {strides = array<i32>} : memref<2x32xf32, #tpu.memory_space<vmem>>, vector<2x32xf32>,
    return
  }
  func.func @transform_0(%arg0: i32) -> (i32, i32) {
    %c0_i32 = arith.constant 0 : i32
    %c0_i32_0 = arith.constant 0 : i32
    return %arg0, %c0_i32 : i32, i32
  }
  func.func @transform_1(%arg0: i32) -> (i32, i32, i32) {
    %c0_i32 = arith.constant 0 : i32
    %c0_i32_0 = arith.constant 0 : i32
    %c0_i32_1 = arith.constant 0 : i32
    return %arg0, %c0_i32, %c0_i32_0 : i32, i32, i32
  }
  func.func @transform_2(%arg0: i32) -> (i32, i32) {
    %c0_i32 = arith.constant 0 : i32
    %c0_i32_0 = arith.constant 0 : i32
    %c0_i32_1 = arith.constant 0 : i32
    return %c0_i32, %c0_i32_0 : i32, i32
  }
  func.func @transform_3(%arg0: i32) -> (i32, i32) {
    %c0_i32 = arith.constant 0 : i32
    %c0_i32_0 = arith.constant 0 : i32
    %c0_i32_1 = arith.constant 0 : i32
    return %c0_i32, %c0_i32_0 : i32, i32
  }
  func.func @transform_4(%arg0: i32) -> (i32, i32) {
    %c0_i32 = arith.constant 0 : i32
    %c0_i32_0 = arith.constant 0 : i32
    %c0_i32_1 = arith.constant 0 : i32
    return %c0_i32, %c0_i32_0 : i32, i32
  }
  func.func @transform_5(%arg0: i32) -> (i32, i32) {
    %c0_i32 = arith.constant 0 : i32
    %c0_i32_0 = arith.constant 0 : i32
    %c0_i32_1 = arith.constant 0 : i32
    return %c0_i32, %c0_i32_0 : i32, i32
  }
  func.func @transform_6(%arg0: i32) -> (i32, i32) {
    %c0_i32 = arith.constant 0 : i32
    %c0_i32_0 = arith.constant 0 : i32
    %c0_i32_1 = arith.constant 0 : i32
    return %c0_i32, %c0_i32_0 : i32, i32
  }
  func.func @transform_7(%arg0: i32) -> (i32, i32) {
    %c0_i32 = arith.constant 0 : i32
    %c0_i32_0 = arith.constant 0 : i32
    return %arg0, %c0_i32 : i32, i32
  }
  func.func @transform_8(%arg0: i32) -> (i32, i32, i32) {
    %c0_i32 = arith.constant 0 : i32
    %c0_i32_0 = arith.constant 0 : i32
    %c0_i32_1 = arith.constant 0 : i32
    return %arg0, %c0_i32, %c0_i32_0 : i32, i32, i32
  }
}

module attributes {stable_mosaic.version = 11 : i64} {
  func.func @_bahdanau_attention_kernel(%arg0: i32, %arg1: memref<2x32xf32, #tpu.memory_space<vmem>>, %arg2: memref<2x8x32xf32, #tpu.memory_space<vmem>>, %arg3: memref<32x16xf32, #tpu.memory_space<vmem>>, %arg4: memref<32x16xf32, #tpu.memory_space<vmem>>, %arg5: memref<1x16xf32, #tpu.memory_space<vmem>>, %arg6: memref<1x16xf32, #tpu.memory_space<vmem>>, %arg7: memref<1x1xf32, #tpu.memory_space<vmem>>, %arg8: memref<2x32xf32, #tpu.memory_space<vmem>>, %arg9: memref<2x8x1xf32, #tpu.memory_space<vmem>>) attributes {dimension_semantics = [#tpu.dimension_semantics<parallel>], iteration_bounds = array<i64: 1>, scalar_prefetch = 0 : i64, scratch_operands = 0 : i64, tpu.core_type = #tpu.core_type<tc>, window_params = [{transform_indices = @transform_0, window_bounds = array<i64: 2, 32>}, {transform_indices = @transform_1, window_bounds = array<i64: 2, 8, 32>}, {pipeline_mode = #tpu.pipeline_mode<synchronous>, transform_indices = @transform_2, window_bounds = array<i64: 32, 16>}, {pipeline_mode = #tpu.pipeline_mode<synchronous>, transform_indices = @transform_3, window_bounds = array<i64: 32, 16>}, {pipeline_mode = #tpu.pipeline_mode<synchronous>, transform_indices = @transform_4, window_bounds = array<i64: 1, 16>}, {pipeline_mode = #tpu.pipeline_mode<synchronous>, transform_indices = @transform_5, window_bounds = array<i64: 1, 16>}, {pipeline_mode = #tpu.pipeline_mode<synchronous>, transform_indices = @transform_6, window_bounds = array<i64: 1, 1>}, {transform_indices = @transform_7, window_bounds = array<i64: 2, 32>}, {transform_indices = @transform_8, window_bounds = array<i64: 2, 8, 1>}]} {
    %c0 = arith.constant 0 : index
    %c0_0 = arith.constant 0 : index
    %c0_1 = arith.constant 0 : index
    %0 = vector.load %arg2[%c0, %c0_0, %c0_1] : memref<2x8x32xf32, #tpu.memory_space<vmem>>, vector<2x8x32xf32>
    %1 = vector.shape_cast %0 : vector<2x8x32xf32> to vector<16x32xf32>
    %c0_2 = arith.constant 0 : index
    %c0_3 = arith.constant 0 : index
    %2 = vector.load %arg3[%c0_2, %c0_3] : memref<32x16xf32, #tpu.memory_space<vmem>>, vector<32x16xf32>
    %cst = arith.constant dense<0.000000e+00> : vector<16x16xf32>
    %3 = tpu.matmul %1, %2, %cst {dimension_numbers = #tpu.dot_dimension_numbers<[1], [0], [0], [1], [0, 0, 1, 1], [], []>} : vector<16x32xf32>, vector<32x16xf32>, vector<16x16xf32> -> vector<16x16xf32>
    %4 = vector.shape_cast %3 : vector<16x16xf32> to vector<2x8x16xf32>
    %c0_4 = arith.constant 0 : index
    %c0_5 = arith.constant 0 : index
    %5 = vector.load %arg1[%c0_4, %c0_5] : memref<2x32xf32, #tpu.memory_space<vmem>>, vector<2x32xf32>
    %c0_6 = arith.constant 0 : index
    %c0_7 = arith.constant 0 : index
    %6 = vector.load %arg4[%c0_6, %c0_7] : memref<32x16xf32, #tpu.memory_space<vmem>>, vector<32x16xf32>
    %cst_8 = arith.constant dense<0.000000e+00> : vector<2x16xf32>
    %7 = tpu.matmul %5, %6, %cst_8 {dimension_numbers = #tpu.dot_dimension_numbers<[1], [0], [0], [1], [0, 0, 1, 1], [], []>} : vector<2x32xf32>, vector<32x16xf32>, vector<2x16xf32> -> vector<2x16xf32>
    %8 = vector.shape_cast %7 : vector<2x16xf32> to vector<2x1x16xf32>
    %c0_9 = arith.constant 0 : index
    %c0_10 = arith.constant 0 : index
    %9 = vector.load %arg5[%c0_9, %c0_10] : memref<1x16xf32, #tpu.memory_space<vmem>>, vector<1x16xf32>
    %10 = vector.shape_cast %9 : vector<1x16xf32> to vector<1x1x16xf32>
    %11 = vector.broadcast %10 : vector<1x1x16xf32> to vector<2x1x16xf32>
    %12 = arith.addf %8, %11 : vector<2x1x16xf32>
    %13 = vector.broadcast %12 : vector<2x1x16xf32> to vector<2x8x16xf32>
    %14 = arith.addf %4, %13 : vector<2x8x16xf32>
    %15 = math.tanh %14 : vector<2x8x16xf32>
    %c0_11 = arith.constant 0 : index
    %c0_12 = arith.constant 0 : index
    %16 = vector.load %arg6[%c0_11, %c0_12] : memref<1x16xf32, #tpu.memory_space<vmem>>, vector<1x16xf32>
    %17 = vector.shape_cast %16 : vector<1x16xf32> to vector<1x1x16xf32>
    %18 = vector.broadcast %17 : vector<1x1x16xf32> to vector<2x8x16xf32>
    %19 = arith.mulf %15, %18 : vector<2x8x16xf32>
    %cst_13 = arith.constant dense<0.000000e+00> : vector<2x8xf32>
    %20 = vector.multi_reduction <add>, %19, %cst_13 [2] : vector<2x8x16xf32> to vector<2x8xf32>
    %21 = vector.shape_cast %20 : vector<2x8xf32> to vector<2x8x1xf32>
    %c0_14 = arith.constant 0 : index
    %c0_15 = arith.constant 0 : index
    %22 = vector.load %arg7[%c0_14, %c0_15] : memref<1x1xf32, #tpu.memory_space<vmem>>, vector<1x1xf32>
    %23 = vector.shape_cast %22 : vector<1x1xf32> to vector<1x1x1xf32>
    %24 = vector.broadcast %23 : vector<1x1x1xf32> to vector<2x8x1xf32>
    %25 = arith.addf %21, %24 : vector<2x8x1xf32>
    %cst_16 = arith.constant dense<0xFF800000> : vector<2x1xf32>
    %26 = vector.multi_reduction <maximumf>, %25, %cst_16 [1] : vector<2x8x1xf32> to vector<2x1xf32>
    %27 = vector.shape_cast %26 : vector<2x1xf32> to vector<2x1x1xf32>
    %28 = vector.broadcast %27 : vector<2x1x1xf32> to vector<2x8x1xf32>
    %29 = arith.subf %25, %28 : vector<2x8x1xf32>
    %30 = math.exp %29 : vector<2x8x1xf32>
    %cst_17 = arith.constant dense<0.000000e+00> : vector<2x1xf32>
    %31 = vector.multi_reduction <add>, %30, %cst_17 [1] : vector<2x8x1xf32> to vector<2x1xf32>
    %32 = vector.shape_cast %31 : vector<2x1xf32> to vector<2x1x1xf32>
    %33 = tpu.reciprocal %32 {approx = true} : vector<2x1x1xf32> -> vector<2x1x1xf32>
    %34 = arith.mulf %32, %33 : vector<2x1x1xf32>
    %cst_18 = arith.constant 2.000000e+00 : f32
    %35 = vector.broadcast %cst_18 : f32 to vector<2x1x1xf32>
    %36 = arith.subf %35, %34 : vector<2x1x1xf32>
    %37 = arith.mulf %33, %36 : vector<2x1x1xf32>
    %38 = vector.broadcast %37 : vector<2x1x1xf32> to vector<2x8x1xf32>
    %39 = arith.mulf %30, %38 : vector<2x8x1xf32>
    %c0_19 = arith.constant 0 : index
    %c0_20 = arith.constant 0 : index
    %c0_21 = arith.constant 0 : index
    %40 = vector.load %arg9[%c0_19, %c0_20, %c0_21] : memref<2x8x1xf32, #tpu.memory_space<vmem>>, vector<2x8x1xf32>
    tpu.vector_store %arg9[%c0_19, %c0_20, %c0_21], %39 {strides = array<i32>} : memref<2x8x1xf32, #tpu.memory_space<vmem>>, vector<2x8x1xf32>,
    %41 = vector.broadcast %39 : vector<2x8x1xf32> to vector<2x8x32xf32>
    %42 = arith.mulf %0, %41 : vector<2x8x32xf32>
    %cst_22 = arith.constant dense<0.000000e+00> : vector<2x32xf32>
    %43 = vector.multi_reduction <add>, %42, %cst_22 [1] : vector<2x8x32xf32> to vector<2x32xf32>
    %c0_23 = arith.constant 0 : index
    %c0_24 = arith.constant 0 : index
    %44 = vector.load %arg8[%c0_23, %c0_24] : memref<2x32xf32, #tpu.memory_space<vmem>>, vector<2x32xf32>
    tpu.vector_store %arg8[%c0_23, %c0_24], %43 {strides = array<i32>} : memref<2x32xf32, #tpu.memory_space<vmem>>, vector<2x32xf32>,
    return
  }
  func.func @transform_0(%arg0: i32) -> (i32, i32) {
    %c0_i32 = arith.constant 0 : i32
    %c0_i32_0 = arith.constant 0 : i32
    return %arg0, %c0_i32 : i32, i32
  }
  func.func @transform_1(%arg0: i32) -> (i32, i32, i32) {
    %c0_i32 = arith.constant 0 : i32
    %c0_i32_0 = arith.constant 0 : i32
    %c0_i32_1 = arith.constant 0 : i32
    return %arg0, %c0_i32, %c0_i32_0 : i32, i32, i32
  }
  func.func @transform_2(%arg0: i32) -> (i32, i32) {
    %c0_i32 = arith.constant 0 : i32
    %c0_i32_0 = arith.constant 0 : i32
    %c0_i32_1 = arith.constant 0 : i32
    return %c0_i32, %c0_i32_0 : i32, i32
  }
  func.func @transform_3(%arg0: i32) -> (i32, i32) {
    %c0_i32 = arith.constant 0 : i32
    %c0_i32_0 = arith.constant 0 : i32
    %c0_i32_1 = arith.constant 0 : i32
    return %c0_i32, %c0_i32_0 : i32, i32
  }
  func.func @transform_4(%arg0: i32) -> (i32, i32) {
    %c0_i32 = arith.constant 0 : i32
    %c0_i32_0 = arith.constant 0 : i32
    %c0_i32_1 = arith.constant 0 : i32
    return %c0_i32, %c0_i32_0 : i32, i32
  }
  func.func @transform_5(%arg0: i32) -> (i32, i32) {
    %c0_i32 = arith.constant 0 : i32
    %c0_i32_0 = arith.constant 0 : i32
    %c0_i32_1 = arith.constant 0 : i32
    return %c0_i32, %c0_i32_0 : i32, i32
  }
  func.func @transform_6(%arg0: i32) -> (i32, i32) {
    %c0_i32 = arith.constant 0 : i32
    %c0_i32_0 = arith.constant 0 : i32
    %c0_i32_1 = arith.constant 0 : i32
    return %c0_i32, %c0_i32_0 : i32, i32
  }
  func.func @transform_7(%arg0: i32) -> (i32, i32) {
    %c0_i32 = arith.constant 0 : i32
    %c0_i32_0 = arith.constant 0 : i32
    return %arg0, %c0_i32 : i32, i32
  }
  func.func @transform_8(%arg0: i32) -> (i32, i32, i32) {
    %c0_i32 = arith.constant 0 : i32
    %c0_i32_0 = arith.constant 0 : i32
    %c0_i32_1 = arith.constant 0 : i32
    return %arg0, %c0_i32, %c0_i32_0 : i32, i32, i32
  }
}

</mosaic_0001>

<llo_original>
// kernel: tpu_custom_call.1
$region0: #{tpu_custom_call.1}
  #allocation0 [shape = 'u32[]', space=smem, size = 0x4, offset = 0x4, fixed_abs, tag = 'smem constant byte address 0x4 - core index']
  #allocation1 [shape = 'u32[144,128]{1,0:T(1,128)}', space=vmem, size = 0x12000, scoped, tag = 'internal scratch']
  #allocation2 [shape = 'f32[1,1]{1,0:T(1,128)S(1)}', space=vmem, size = 0x200, scoped, tag = 'scoped memory for tpu_custom_call.1']
  %s0 = inlined_call_operand.vmem [shape: f32[2,32], index: 0, kind: input, shape index: {}]
  %s1 = inlined_call_operand.vmem [shape: f32[2,8,32], index: 1, kind: input, shape index: {}]
  %s2 = inlined_call_operand.vmem [shape: f32[32,16], index: 2, kind: input, shape index: {}]
  %s3 = inlined_call_operand.vmem [shape: f32[32,16], index: 3, kind: input, shape index: {}]
  %s4 = inlined_call_operand.vmem [shape: f32[1,16], index: 4, kind: input, shape index: {}]
  %s5 = inlined_call_operand.vmem [shape: f32[1,16], index: 5, kind: input, shape index: {}]
  %s6 = inlined_call_operand.<no memory space> [shape: f32[1,1], index: 6, kind: input, shape index: {}]
  %s7 = inlined_call_operand.hbm [shape: f32[2,32], index: 7, kind: output, shape index: {0}]
  %s8 = inlined_call_operand.vmem [shape: f32[2,8,1], index: 8, kind: output, shape index: {1}]
  %9 = xla_tuple %s7, %s8
  %s10 = sld [smem:[#allocation0]]
  $region46: #{tpu_custom_call.1} parent=0
    _
  %s12 = ssub.s32 1, %s10
  %s13 = scalar_select 0, %s12, %s10
  %v14 = vstv %s6
  %15 = vst [vmem:[#allocation2] sm:$0x1] %v14
  $region1: #{tpu_custom_call.1} parent=0
    #allocation3 [shape = 'u8[1024]{0}', space=vmem, size = 0x400, scoped, tag = 'output window, operand 0, single buffered']
    #allocation4 [shape = 's32[1]{0}', space=sflag, size = 0x4, scoped, tag = 'scoped memory for tpu_custom_call.1']
    %16 = vsyncpa [#allocation4], 0
    // Predicated region
    $region2: #{tpu_custom_call.1} parent=1 // pred_check
      _
    $region3: #{tpu_custom_call.1} parent=1 // pred_check_branch
      %18 = sbr.rel (0) target = $region5
    $region4: #{tpu_custom_call.1} parent=1 // pred_region
      _
    $region5: #{tpu_custom_call.1} parent=1 // pred_fallthru
      _
    // Predicated region
    $region6: #{tpu_custom_call.1} parent=1 // pred_check
      _
    $region7: #{tpu_custom_call.1} parent=1 // pred_check_branch
      %20 = sbr.rel (0) target = $region9
    $region8: #{tpu_custom_call.1} parent=1 // pred_region
      _
    $region9: #{tpu_custom_call.1} parent=1 // pred_fallthru
      _
    // Predicated region
    $region10: #{tpu_custom_call.1} parent=1 // pred_check
      _
    $region11: #{tpu_custom_call.1} parent=1 // pred_check_branch
      %22 = sbr.rel (0) target = $region13
    $region12: #{tpu_custom_call.1} parent=1 // pred_region
      _
    $region13: #{tpu_custom_call.1} parent=1 // pred_fallthru
      _
    // Predicated region
    $region14: #{tpu_custom_call.1} parent=1 // pred_check
      _
    $region15: #{tpu_custom_call.1} parent=1 // pred_check_branch
      %24 = sbr.rel (0) target = $region17
    $region16: #{tpu_custom_call.1} parent=1 // pred_region
      _
    $region17: #{tpu_custom_call.1} parent=1 // pred_fallthru
      _
    // Predicated region
    $region18: #{tpu_custom_call.1} parent=1 // pred_check
      _
    $region19: #{tpu_custom_call.1} parent=1 // pred_check_branch
      %26 = sbr.rel (0) target = $region21
    $region20: #{tpu_custom_call.1} parent=1 // pred_region
      _
    $region21: #{tpu_custom_call.1} parent=1 // pred_fallthru
      _
    // Predicated region
    $region22: #{tpu_custom_call.1} parent=1 // pred_check
      _
    $region23: #{tpu_custom_call.1} parent=1 // pred_check_branch
      %28 = sbr.rel (0) target = $region25
    $region24: #{tpu_custom_call.1} parent=1 // pred_region
      _
    $region25: #{tpu_custom_call.1} parent=1 // pred_fallthru
      _
    // Predicated region
    $region26: #{tpu_custom_call.1} parent=1 // pred_check
      _
    $region27: #{tpu_custom_call.1} parent=1 // pred_check_branch
      %30 = sbr.rel (0) target = $region29
    $region28: #{tpu_custom_call.1} parent=1 // pred_region
      _
    $region29: #{tpu_custom_call.1} parent=1 // pred_fallthru
      _
    %v31 = vld [vmem:[%s1] sm:$0xff]
    %v32 = vld [vmem:[%s1 + $0x8] sm:$0xff]
    %v33 = vld [vmem:[%s2] sm:$0xff]
    %v34 = vld [vmem:[%s2 + $0x8] sm:$0xff]
    %v35 = vld [vmem:[%s2 + $0x10] sm:$0xff]
    %v36 = vld [vmem:[%s2 + $0x18] sm:$0xff]
    %vm37 = vcmask 261120
    %v39 = vsel %vm37, %v31, 0
    %v42 = vsel %vm37, %v32, 0
    %44 = vmatprep.subr.mxu0 0.0
    %45 = vmatpush1.msra.mxu0 %v33
    %46 = vmatprep.subr.mxu0 0.0
    %47 = vmatpush1.msra.mxu0 %v34
    %48 = vmatprep.subr.mxu0 0.0
    %49 = vmatpush1.msra.mxu0 %v35
    %50 = vmatprep.subr.mxu0 0.0
    %51 = vmatpush1.msra.mxu0 %v36
    %52 = vmatprep.subr.mxu0 0.0
    %53 = vmatpush1.msra.mxu0 0.0
    %54 = vmatprep.subr.mxu0 0.0
    %55 = vmatpush1.msra.mxu0 0.0
    %56 = vmatprep.subr.mxu0 0.0
    %57 = vmatpush1.msra.mxu0 0.0
    %58 = vmatprep.subr.mxu0 0.0
    %59 = vmatpush1.msra.mxu0 0.0
    %60 = vmatprep.subr.mxu0 0.0
    %61 = vmatpush1.msra.mxu0 0.0
    %62 = vmatprep.subr.mxu0 0.0
    %63 = vmatpush1.msra.mxu0 0.0
    %64 = vmatprep.subr.mxu0 0.0
    %65 = vmatpush1.msra.mxu0 0.0
    %66 = vmatprep.subr.mxu0 0.0
    %67 = vmatpush1.msra.mxu0 0.0
    %68 = vmatprep.subr.mxu0 0.0
    %69 = vmatpush1.msra.mxu0 0.0
    %70 = vmatprep.subr.mxu0 0.0
    %71 = vmatpush1.msra.mxu0 0.0
    %72 = vmatprep.subr.mxu0 0.0
    %73 = vmatpush1.msra.mxu0 0.0
    %74 = vmatprep.subr.mxu0 0.0
    %75 = vmatpush1.msra.mxu0 0.0
    %76 = vmatprep.subr.mxu0 0.0
    %77 = vmatpush1.msra.mxu0 0.0
    %78 = vmatprep.subr.mxu0 0.0
    %79 = vmatpush1.msra.mxu0 0.0
    %80 = vmatprep.subr.mxu0 0.0
    %81 = vmatpush1.msra.mxu0 0.0
    %82 = vmatprep.subr.mxu0 0.0
    %83 = vmatpush1.msra.mxu0 0.0
    %84 = vmatprep.subr.mxu0 0.0
    %85 = vmatpush1.msra.mxu0 0.0
    %86 = vmatprep.subr.mxu0 0.0
    %87 = vmatpush1.msra.mxu0 0.0
    %88 = vmatprep.subr.mxu0 0.0
    %89 = vmatpush1.msra.mxu0 0.0
    %90 = vmatprep.subr.mxu0 0.0
    %91 = vmatpush1.msra.mxu0 0.0
    %92 = vmatprep.subr.mxu0 0.0
    %93 = vmatpush1.msra.mxu0 0.0
    %94 = vmatprep.subr.mxu0 0.0
    %95 = vmatpush1.msra.mxu0 0.0
    %96 = vmatprep.subr.mxu0 0.0
    %97 = vmatpush1.msra.mxu0 0.0
    %98 = vmatprep.subr.mxu0 0.0
    %99 = vmatpush1.msra.mxu0 0.0
    %100 = vmatprep.subr.mxu0 0.0
    %101 = vmatpush1.msra.mxu0 0.0
    %102 = vmatprep.subr.mxu0 0.0
    %103 = vmatpush1.msra.mxu0 0.0
    %104 = vmatprep.subr.mxu0 0.0
    %105 = vmatpush1.msra.mxu0 0.0
    %106 = vmatprep.subr.mxu0 0.0
    %107 = vmatpush1.msra.mxu0 0.0
    %108 = vmatprep.mubr.f32.mxu0 0.0
    %109 = vmatmul.mubr.f32.gmra.mrb[0].mxu0 %v39
    %v110 = vpop.f32.mrb[0].mxu0
    %v111 = vadd.f32 0.0, %v110
    %v112 = vpop.f32.mrb[0].mxu0
    %113 = vmatprep.mubr.f32.mxu0 0.0
    %114 = vmatmul.mubr.f32.gmra.mrb[0].mxu0 %v42
    %v115 = vpop.f32.mrb[0].mxu0
    %v116 = vadd.f32 0.0, %v115
    %v117 = vpop.f32.mrb[0].mxu0
    %118 = vdwg.mxu0
    %v119 = vld [vmem:[%s0] sm:$0x3]
    %v120 = vld [vmem:[%s3] sm:$0xff]
    %v121 = vld [vmem:[%s3 + $0x8] sm:$0xff]
    %v122 = vld [vmem:[%s3 + $0x10] sm:$0xff]
    %v123 = vld [vmem:[%s3 + $0x18] sm:$0xff]
    %v125 = vsel %vm37, %v119, 0
    %127 = vmatprep.subr.mxu0 0.0
    %128 = vmatpush1.msra.mxu0 %v120
    %129 = vmatprep.subr.mxu0 0.0
    %130 = vmatpush1.msra.mxu0 %v121
    %131 = vmatprep.subr.mxu0 0.0
    %132 = vmatpush1.msra.mxu0 %v122
    %133 = vmatprep.subr.mxu0 0.0
    %134 = vmatpush1.msra.mxu0 %v123
    %135 = vmatprep.subr.mxu0 0.0
    %136 = vmatpush1.msra.mxu0 0.0
    %137 = vmatprep.subr.mxu0 0.0
    %138 = vmatpush1.msra.mxu0 0.0
    %139 = vmatprep.subr.mxu0 0.0
    %140 = vmatpush1.msra.mxu0 0.0
    %141 = vmatprep.subr.mxu0 0.0
    %142 = vmatpush1.msra.mxu0 0.0
    %143 = vmatprep.subr.mxu0 0.0
    %144 = vmatpush1.msra.mxu0 0.0
    %145 = vmatprep.subr.mxu0 0.0
    %146 = vmatpush1.msra.mxu0 0.0
    %147 = vmatprep.subr.mxu0 0.0
    %148 = vmatpush1.msra.mxu0 0.0
    %149 = vmatprep.subr.mxu0 0.0
    %150 = vmatpush1.msra.mxu0 0.0
    %151 = vmatprep.subr.mxu0 0.0
    %152 = vmatpush1.msra.mxu0 0.0
    %153 = vmatprep.subr.mxu0 0.0
    %154 = vmatpush1.msra.mxu0 0.0
    %155 = vmatprep.subr.mxu0 0.0
    %156 = vmatpush1.msra.mxu0 0.0
    %157 = vmatprep.subr.mxu0 0.0
    %158 = vmatpush1.msra.mxu0 0.0
    %159 = vmatprep.subr.mxu0 0.0
    %160 = vmatpush1.msra.mxu0 0.0
    %161 = vmatprep.subr.mxu0 0.0
    %162 = vmatpush1.msra.mxu0 0.0
    %163 = vmatprep.subr.mxu0 0.0
    %164 = vmatpush1.msra.mxu0 0.0
    %165 = vmatprep.subr.mxu0 0.0
    %166 = vmatpush1.msra.mxu0 0.0
    %167 = vmatprep.subr.mxu0 0.0
    %168 = vmatpush1.msra.mxu0 0.0
    %169 = vmatprep.subr.mxu0 0.0
    %170 = vmatpush1.msra.mxu0 0.0
    %171 = vmatprep.subr.mxu0 0.0
    %172 = vmatpush1.msra.mxu0 0.0
    %173 = vmatprep.subr.mxu0 0.0
    %174 = vmatpush1.msra.mxu0 0.0
    %175 = vmatprep.subr.mxu0 0.0
    %176 = vmatpush1.msra.mxu0 0.0
    %177 = vmatprep.subr.mxu0 0.0
    %178 = vmatpush1.msra.mxu0 0.0
    %179 = vmatprep.subr.mxu0 0.0
    %180 = vmatpush1.msra.mxu0 0.0
    %181 = vmatprep.subr.mxu0 0.0
    %182 = vmatpush1.msra.mxu0 0.0
    %183 = vmatprep.subr.mxu0 0.0
    %184 = vmatpush1.msra.mxu0 0.0
    %185 = vmatprep.subr.mxu0 0.0
    %186 = vmatpush1.msra.mxu0 0.0
    %187 = vmatprep.subr.mxu0 0.0
    %188 = vmatpush1.msra.mxu0 0.0
    %189 = vmatprep.subr.mxu0 0.0
    %190 = vmatpush1.msra.mxu0 0.0
    %191 = vmatprep.mubr.f32.mxu0 0.0
    %192 = vmatmul.mubr.f32.gmra.mrb[0].mxu0 %v125
    %v193 = vpop.f32.mrb[0].mxu0
    %v194 = vadd.f32 0.0, %v193
    %v195 = vpop.f32.mrb[0].mxu0
    %196 = vdwg.mxu0
    %v199 = vunpack.c.l.s4 1966171168
    %v200 = vunpack.c.0.s8 %v199
    %v201 = vlaneseq
    %v202 = vshrl.u32 %v201, 7
    %v203 = vsub.s32 %v200, %v202
    %v204 = vrot.slane %v194, %v203
    %v205 = vcombine.high %v204, %v204
    %v207 = vunpack.c.l.s4 1966171168
    %v208 = vunpack.c.0.s8 %v207
    %v209 = vlaneseq
    %v210 = vshrl.u32 %v209, 7
    %v211 = vsub.s32 %v208, %v210
    %v212 = vrot.slane %v204, %v211
    %v214 = vunpack.c.l.s4 1966171168
    %v215 = vunpack.c.0.s8 %v214
    %v216 = vlaneseq
    %v217 = vshrl.u32 %v216, 7
    %v218 = vsub.s32 %v215, %v217
    %v219 = vrot.slane %v205, %v218
    %v222 = vld [vmem:[%s4] sm:$0x1]
    %v223 = vadd.f32 %v212, %v222
    %v224 = vadd.f32 %v219, %v222
    %v227 = vlaneseq
    %v228 = vshrl.u32 %v227, 7
    %v229 = vsub.s32 0, %v228
    %v230 = vrot.slane %v223, %v229
    %v231 = vlaneseq
    %v232 = vshrl.u32 %v231, 7
    %v233 = vsub.s32 0, %v232
    %v234 = vrot.slane %v224, %v233
    %v237 = vadd.f32 %v111, %v230
    %v238 = vadd.f32 %v116, %v234
    %v239 = vtanh.pop %v237
    %v240 = vtanh.pop %v238
    %v241 = vld [vmem:[%s5] sm:$0x1]
    %v243 = vlaneseq
    %v244 = vshrl.u32 %v243, 7
    %v245 = vsub.s32 0, %v244
    %v246 = vrot.slane %v241, %v245
    %v248 = vmul.f32 %v239, %v246
    %v249 = vmul.f32 %v240, %v246
    %vm250 = vcmask 130048
    %v251 = vsel %vm250, %v248, 0.0
    %252 = vadd.xlane.f32.xlu0 %v251
    %v253 = vpop.xlane.xlu0 %252
    %v254 = vsel %vm250, %v249, 0.0
    %255 = vadd.xlane.f32.xlu0 %v254
    %v256 = vpop.xlane.xlu0 %255
    %v257 = vld [vmem:[#allocation2] sm:$0x1]
    %v259 = vlaneseq
    %v260 = vshrl.u32 %v259, 7
    %v261 = vsub.s32 0, %v260
    %v262 = vrot.slane %v257, %v261
    %v264 = vadd.f32 %v253, %v262
    %v265 = vadd.f32 %v256, %v262
    %vm266 = vcmask 7168
    %v267 = vsel %vm266, %v264, -inf
    %v268 = vrot.slane %v267, 4
    %v269 = vmax.f32 %v267, %v268
    %v270 = vrot.slane %v269, 2
    %v271 = vmax.f32 %v269, %v270
    %v272 = vrot.slane %v271, 1
    %v273 = vmax.f32 %v271, %v272
    %v274 = vsel %vm266, %v265, -inf
    %v275 = vrot.slane %v274, 4
    %v276 = vmax.f32 %v274, %v275
    %v277 = vrot.slane %v276, 2
    %v278 = vmax.f32 %v276, %v277
    %v279 = vrot.slane %v278, 1
    %v280 = vmax.f32 %v278, %v279
    %v281 = vsub.f32 %v264, %v273
    %v282 = vsub.f32 %v265, %v280
    %v283 = vmul.f32 %v281, 1.442695
    %v284 = vpow.pop %v283
    %v285 = vmul.f32 %v282, 1.442695
    %v286 = vpow.pop %v285
    %v287 = vsel %vm266, %v284, 0.0
    %v288 = vrot.slane %v287, 4
    %v289 = vadd.f32 %v287, %v288
    %v290 = vrot.slane %v289, 2
    %v291 = vadd.f32 %v289, %v290
    %v292 = vrot.slane %v291, 1
    %v293 = vadd.f32 %v291, %v292
    %v294 = vsel %vm266, %v286, 0.0
    %v295 = vrot.slane %v294, 4
    %v296 = vadd.f32 %v294, %v295
    %v297 = vrot.slane %v296, 2
    %v298 = vadd.f32 %v296, %v297
    %v299 = vrot.slane %v298, 1
    %v300 = vadd.f32 %v298, %v299
    %v301 = vrcp.pop %v293
    %v302 = vrcp.pop %v300
    %v303 = vmul.f32 %v293, %v301
    %v304 = vmul.f32 %v300, %v302
    %v305 = vsub.f32 2.0, %v303
    %v306 = vsub.f32 2.0, %v304
    %v307 = vmul.f32 %v301, %v305
    %v308 = vmul.f32 %v302, %v306
    %v309 = vmul.f32 %v284, %v307
    %v310 = vmul.f32 %v286, %v308
    %311 = vst.msk [vmem:[%s8] sm:$0xff] %vm266, %v309
    %312 = vst.msk [vmem:[%s8 + $0x8] sm:$0xff] %vm266, %v310
    %314 = vset.pattern.permute.xlu0 0
    %315 = vperm.xlu0 %314, %v309
    %v316 = vpop.permute.xlu0 %315
    %319 = vset.pattern.permute.xlu0 0
    %320 = vperm.xlu0 %319, %v310
    %v321 = vpop.permute.xlu0 %320
    %v323 = vmul.f32 %v31, %v316
    %v324 = vmul.f32 %v32, %v321
    %v325 = vsel %vm37, %v323, 0.0
    %v326 = vrot.slane %v325, 4
    %v327 = vadd.f32 %v325, %v326
    %v328 = vrot.slane %v327, 2
    %v329 = vadd.f32 %v327, %v328
    %v330 = vrot.slane %v329, 1
    %v331 = vadd.f32 %v329, %v330
    %v332 = vsel %vm37, %v324, 0.0
    %v333 = vrot.slane %v332, 4
    %v334 = vadd.f32 %v332, %v333
    %v335 = vrot.slane %v334, 2
    %v336 = vadd.f32 %v334, %v335
    %v337 = vrot.slane %v336, 1
    %v338 = vadd.f32 %v336, %v337
    %vm341 = vcmask 1041409
    %v342 = vsel %vm341, %v338, %v331
    %vm344 = vcmask 254976
    %345 = vst.msk [vmem:[#allocation3] sm:$0x3] %vm344, %v342
    // Predicated region
    $region30: #{tpu_custom_call.1} parent=1 // pred_check
      _
    $region31: #{tpu_custom_call.1} parent=1 // pred_check_branch
      %347 = sbr.rel (0) target = $region33
    $region32: #{tpu_custom_call.1} parent=1 // pred_region
      %s349 = ssub.s32 32, 32
      %350 = vsyncadd [#allocation4], %s349
      %s352 = sshll.u32 [#allocation3], 4
      %s353 = int_to_ptr.vmem [resolvable:$true] %s352
      %355 = dma.vmem_to_hbm [thread:$0]  %s353, 32, %s7, [#allocation4]
    $region33: #{tpu_custom_call.1} parent=1 // pred_fallthru
      _
    // Predicated region
    $region34: #{tpu_custom_call.1} parent=1 // pred_check
      _
    $region35: #{tpu_custom_call.1} parent=1 // pred_check_branch
      %357 = sbr.rel (0) target = $region37
    $region36: #{tpu_custom_call.1} parent=1 // pred_region
      _
    $region37: #{tpu_custom_call.1} parent=1 // pred_fallthru
      _
    // Predicated region
    $region38: #{tpu_custom_call.1} parent=1 // pred_check
      _
    $region39: #{tpu_custom_call.1} parent=1 // pred_check_branch
      %359 = sbr.rel (0) target = $region41
    $region40: #{tpu_custom_call.1} parent=1 // pred_region
      %360 = dma.done [#allocation4], 32
    $region41: #{tpu_custom_call.1} parent=1 // pred_fallthru
      _
    // Predicated region
    $region42: #{tpu_custom_call.1} parent=1 // pred_check
      _
    $region43: #{tpu_custom_call.1} parent=1 // pred_check_branch
      %362 = sbr.rel (0) target = $region45
    $region44: #{tpu_custom_call.1} parent=1 // pred_region
      _
    $region45: #{tpu_custom_call.1} parent=1 // pred_fallthru
      _
    %363 = vsyncpa [#allocation4], 1

// kernel: tpu_custom_call.1
$region0: #{tpu_custom_call.1}
  #allocation0 [shape = 'u32[]', space=smem, size = 0x4, offset = 0x4, fixed_abs, tag = 'smem constant byte address 0x4 - core index']
  #allocation1 [shape = 'u32[144,128]{1,0:T(1,128)}', space=vmem, size = 0x12000, scoped, tag = 'internal scratch']
  #allocation2 [shape = 'f32[1,1]{1,0:T(1,128)S(1)}', space=vmem, size = 0x200, scoped, tag = 'scoped memory for tpu_custom_call.1']
  %s0 = inlined_call_operand.vmem [shape: f32[2,32], index: 0, kind: input, shape index: {}]
  %s1 = inlined_call_operand.vmem [shape: f32[2,8,32], index: 1, kind: input, shape index: {}]
  %s2 = inlined_call_operand.vmem [shape: f32[32,16], index: 2, kind: input, shape index: {}]
  %s3 = inlined_call_operand.vmem [shape: f32[32,16], index: 3, kind: input, shape index: {}]
  %s4 = inlined_call_operand.vmem [shape: f32[1,16], index: 4, kind: input, shape index: {}]
  %s5 = inlined_call_operand.vmem [shape: f32[1,16], index: 5, kind: input, shape index: {}]
  %s6 = inlined_call_operand.<no memory space> [shape: f32[1,1], index: 6, kind: input, shape index: {}]
  %s7 = inlined_call_operand.hbm [shape: f32[2,32], index: 7, kind: output, shape index: {0}]
  %s8 = inlined_call_operand.vmem [shape: f32[2,8,1], index: 8, kind: output, shape index: {1}]
  %9 = xla_tuple %s7, %s8
  %s10 = sld [smem:[#allocation0]]
  $region46: #{tpu_custom_call.1} parent=0
    _
  %s12 = ssub.s32 1, %s10
  %s13 = scalar_select 0, %s12, %s10
  %v14 = vstv %s6
  %15 = vst [vmem:[#allocation2] sm:$0x1] %v14
  $region1: #{tpu_custom_call.1} parent=0
    #allocation3 [shape = 'u8[1024]{0}', space=vmem, size = 0x400, scoped, tag = 'output window, operand 0, single buffered']
    #allocation4 [shape = 's32[1]{0}', space=sflag, size = 0x4, scoped, tag = 'scoped memory for tpu_custom_call.1']
    %16 = vsyncpa [#allocation4], 0
    // Predicated region
    $region2: #{tpu_custom_call.1} parent=1 // pred_check
      _
    $region3: #{tpu_custom_call.1} parent=1 // pred_check_branch
      %18 = sbr.rel (0) target = $region5
    $region4: #{tpu_custom_call.1} parent=1 // pred_region
      _
    $region5: #{tpu_custom_call.1} parent=1 // pred_fallthru
      _
    // Predicated region
    $region6: #{tpu_custom_call.1} parent=1 // pred_check
      _
    $region7: #{tpu_custom_call.1} parent=1 // pred_check_branch
      %20 = sbr.rel (0) target = $region9
    $region8: #{tpu_custom_call.1} parent=1 // pred_region
      _
    $region9: #{tpu_custom_call.1} parent=1 // pred_fallthru
      _
    // Predicated region
    $region10: #{tpu_custom_call.1} parent=1 // pred_check
      _
    $region11: #{tpu_custom_call.1} parent=1 // pred_check_branch
      %22 = sbr.rel (0) target = $region13
    $region12: #{tpu_custom_call.1} parent=1 // pred_region
      _
    $region13: #{tpu_custom_call.1} parent=1 // pred_fallthru
      _
    // Predicated region
    $region14: #{tpu_custom_call.1} parent=1 // pred_check
      _
    $region15: #{tpu_custom_call.1} parent=1 // pred_check_branch
      %24 = sbr.rel (0) target = $region17
    $region16: #{tpu_custom_call.1} parent=1 // pred_region
      _
    $region17: #{tpu_custom_call.1} parent=1 // pred_fallthru
      _
    // Predicated region
    $region18: #{tpu_custom_call.1} parent=1 // pred_check
      _
    $region19: #{tpu_custom_call.1} parent=1 // pred_check_branch
      %26 = sbr.rel (0) target = $region21
    $region20: #{tpu_custom_call.1} parent=1 // pred_region
      _
    $region21: #{tpu_custom_call.1} parent=1 // pred_fallthru
      _
    // Predicated region
    $region22: #{tpu_custom_call.1} parent=1 // pred_check
      _
    $region23: #{tpu_custom_call.1} parent=1 // pred_check_branch
      %28 = sbr.rel (0) target = $region25
    $region24: #{tpu_custom_call.1} parent=1 // pred_region
      _
    $region25: #{tpu_custom_call.1} parent=1 // pred_fallthru
      _
    // Predicated region
    $region26: #{tpu_custom_call.1} parent=1 // pred_check
      _
    $region27: #{tpu_custom_call.1} parent=1 // pred_check_branch
      %30 = sbr.rel (0) target = $region29
    $region28: #{tpu_custom_call.1} parent=1 // pred_region
      _
    $region29: #{tpu_custom_call.1} parent=1 // pred_fallthru
      _
    %v31 = vld [vmem:[%s1] sm:$0xff]
    %v32 = vld [vmem:[%s1 + $0x8] sm:$0xff]
    %v33 = vld [vmem:[%s2] sm:$0xff]
    %v34 = vld [vmem:[%s2 + $0x8] sm:$0xff]
    %v35 = vld [vmem:[%s2 + $0x10] sm:$0xff]
    %v36 = vld [vmem:[%s2 + $0x18] sm:$0xff]
    %vm37 = vcmask 261120
    %v39 = vsel %vm37, %v31, 0
    %v42 = vsel %vm37, %v32, 0
    %44 = vmatprep.subr.mxu0 0.0
    %45 = vmatpush1.msra.mxu0 %v33
    %46 = vmatprep.subr.mxu0 0.0
    %47 = vmatpush1.msra.mxu0 %v34
    %48 = vmatprep.subr.mxu0 0.0
    %49 = vmatpush1.msra.mxu0 %v35
    %50 = vmatprep.subr.mxu0 0.0
    %51 = vmatpush1.msra.mxu0 %v36
    %52 = vmatprep.subr.mxu0 0.0
    %53 = vmatpush1.msra.mxu0 0.0
    %54 = vmatprep.subr.mxu0 0.0
    %55 = vmatpush1.msra.mxu0 0.0
    %56 = vmatprep.subr.mxu0 0.0
    %57 = vmatpush1.msra.mxu0 0.0
    %58 = vmatprep.subr.mxu0 0.0
    %59 = vmatpush1.msra.mxu0 0.0
    %60 = vmatprep.subr.mxu0 0.0
    %61 = vmatpush1.msra.mxu0 0.0
    %62 = vmatprep.subr.mxu0 0.0
    %63 = vmatpush1.msra.mxu0 0.0
    %64 = vmatprep.subr.mxu0 0.0
    %65 = vmatpush1.msra.mxu0 0.0
    %66 = vmatprep.subr.mxu0 0.0
    %67 = vmatpush1.msra.mxu0 0.0
    %68 = vmatprep.subr.mxu0 0.0
    %69 = vmatpush1.msra.mxu0 0.0
    %70 = vmatprep.subr.mxu0 0.0
    %71 = vmatpush1.msra.mxu0 0.0
    %72 = vmatprep.subr.mxu0 0.0
    %73 = vmatpush1.msra.mxu0 0.0
    %74 = vmatprep.subr.mxu0 0.0
    %75 = vmatpush1.msra.mxu0 0.0
    %76 = vmatprep.subr.mxu0 0.0
    %77 = vmatpush1.msra.mxu0 0.0
    %78 = vmatprep.subr.mxu0 0.0
    %79 = vmatpush1.msra.mxu0 0.0
    %80 = vmatprep.subr.mxu0 0.0
    %81 = vmatpush1.msra.mxu0 0.0
    %82 = vmatprep.subr.mxu0 0.0
    %83 = vmatpush1.msra.mxu0 0.0
    %84 = vmatprep.subr.mxu0 0.0
    %85 = vmatpush1.msra.mxu0 0.0
    %86 = vmatprep.subr.mxu0 0.0
    %87 = vmatpush1.msra.mxu0 0.0
    %88 = vmatprep.subr.mxu0 0.0
    %89 = vmatpush1.msra.mxu0 0.0
    %90 = vmatprep.subr.mxu0 0.0
    %91 = vmatpush1.msra.mxu0 0.0
    %92 = vmatprep.subr.mxu0 0.0
    %93 = vmatpush1.msra.mxu0 0.0
    %94 = vmatprep.subr.mxu0 0.0
    %95 = vmatpush1.msra.mxu0 0.0
    %96 = vmatprep.subr.mxu0 0.0
    %97 = vmatpush1.msra.mxu0 0.0
    %98 = vmatprep.subr.mxu0 0.0
    %99 = vmatpush1.msra.mxu0 0.0
    %100 = vmatprep.subr.mxu0 0.0
    %101 = vmatpush1.msra.mxu0 0.0
    %102 = vmatprep.subr.mxu0 0.0
    %103 = vmatpush1.msra.mxu0 0.0
    %104 = vmatprep.subr.mxu0 0.0
    %105 = vmatpush1.msra.mxu0 0.0
    %106 = vmatprep.subr.mxu0 0.0
    %107 = vmatpush1.msra.mxu0 0.0
    %108 = vmatprep.mubr.f32.mxu0 0.0
    %109 = vmatmul.mubr.f32.gmra.mrb[0].mxu0 %v39
    %v110 = vpop.f32.mrb[0].mxu0
    %v111 = vadd.f32 0.0, %v110
    %v112 = vpop.f32.mrb[0].mxu0
    %113 = vmatprep.mubr.f32.mxu0 0.0
    %114 = vmatmul.mubr.f32.gmra.mrb[0].mxu0 %v42
    %v115 = vpop.f32.mrb[0].mxu0
    %v116 = vadd.f32 0.0, %v115
    %v117 = vpop.f32.mrb[0].mxu0
    %118 = vdwg.mxu0
    %v119 = vld [vmem:[%s0] sm:$0x3]
    %v120 = vld [vmem:[%s3] sm:$0xff]
    %v121 = vld [vmem:[%s3 + $0x8] sm:$0xff]
    %v122 = vld [vmem:[%s3 + $0x10] sm:$0xff]
    %v123 = vld [vmem:[%s3 + $0x18] sm:$0xff]
    %v125 = vsel %vm37, %v119, 0
    %127 = vmatprep.subr.mxu0 0.0
    %128 = vmatpush1.msra.mxu0 %v120
    %129 = vmatprep.subr.mxu0 0.0
    %130 = vmatpush1.msra.mxu0 %v121
    %131 = vmatprep.subr.mxu0 0.0
    %132 = vmatpush1.msra.mxu0 %v122
    %133 = vmatprep.subr.mxu0 0.0
    %134 = vmatpush1.msra.mxu0 %v123
    %135 = vmatprep.subr.mxu0 0.0
    %136 = vmatpush1.msra.mxu0 0.0
    %137 = vmatprep.subr.mxu0 0.0
    %138 = vmatpush1.msra.mxu0 0.0
    %139 = vmatprep.subr.mxu0 0.0
    %140 = vmatpush1.msra.mxu0 0.0
    %141 = vmatprep.subr.mxu0 0.0
    %142 = vmatpush1.msra.mxu0 0.0
    %143 = vmatprep.subr.mxu0 0.0
    %144 = vmatpush1.msra.mxu0 0.0
    %145 = vmatprep.subr.mxu0 0.0
    %146 = vmatpush1.msra.mxu0 0.0
    %147 = vmatprep.subr.mxu0 0.0
    %148 = vmatpush1.msra.mxu0 0.0
    %149 = vmatprep.subr.mxu0 0.0
    %150 = vmatpush1.msra.mxu0 0.0
    %151 = vmatprep.subr.mxu0 0.0
    %152 = vmatpush1.msra.mxu0 0.0
    %153 = vmatprep.subr.mxu0 0.0
    %154 = vmatpush1.msra.mxu0 0.0
    %155 = vmatprep.subr.mxu0 0.0
    %156 = vmatpush1.msra.mxu0 0.0
    %157 = vmatprep.subr.mxu0 0.0
    %158 = vmatpush1.msra.mxu0 0.0
    %159 = vmatprep.subr.mxu0 0.0
    %160 = vmatpush1.msra.mxu0 0.0
    %161 = vmatprep.subr.mxu0 0.0
    %162 = vmatpush1.msra.mxu0 0.0
    %163 = vmatprep.subr.mxu0 0.0
    %164 = vmatpush1.msra.mxu0 0.0
    %165 = vmatprep.subr.mxu0 0.0
    %166 = vmatpush1.msra.mxu0 0.0
    %167 = vmatprep.subr.mxu0 0.0
    %168 = vmatpush1.msra.mxu0 0.0
    %169 = vmatprep.subr.mxu0 0.0
    %170 = vmatpush1.msra.mxu0 0.0
    %171 = vmatprep.subr.mxu0 0.0
    %172 = vmatpush1.msra.mxu0 0.0
    %173 = vmatprep.subr.mxu0 0.0
    %174 = vmatpush1.msra.mxu0 0.0
    %175 = vmatprep.subr.mxu0 0.0
    %176 = vmatpush1.msra.mxu0 0.0
    %177 = vmatprep.subr.mxu0 0.0
    %178 = vmatpush1.msra.mxu0 0.0
    %179 = vmatprep.subr.mxu0 0.0
    %180 = vmatpush1.msra.mxu0 0.0
    %181 = vmatprep.subr.mxu0 0.0
    %182 = vmatpush1.msra.mxu0 0.0
    %183 = vmatprep.subr.mxu0 0.0
    %184 = vmatpush1.msra.mxu0 0.0
    %185 = vmatprep.subr.mxu0 0.0
    %186 = vmatpush1.msra.mxu0 0.0
    %187 = vmatprep.subr.mxu0 0.0
    %188 = vmatpush1.msra.mxu0 0.0
    %189 = vmatprep.subr.mxu0 0.0
    %190 = vmatpush1.msra.mxu0 0.0
    %191 = vmatprep.mubr.f32.mxu0 0.0
    %192 = vmatmul.mubr.f32.gmra.mrb[0].mxu0 %v125
    %v193 = vpop.f32.mrb[0].mxu0
    %v194 = vadd.f32 0.0, %v193
    %v195 = vpop.f32.mrb[0].mxu0
    %196 = vdwg.mxu0
    %v199 = vunpack.c.l.s4 1966171168
    %v200 = vunpack.c.0.s8 %v199
    %v201 = vlaneseq
    %v202 = vshrl.u32 %v201, 7
    %v203 = vsub.s32 %v200, %v202
    %v204 = vrot.slane %v194, %v203
    %v205 = vcombine.high %v204, %v204
    %v207 = vunpack.c.l.s4 1966171168
    %v208 = vunpack.c.0.s8 %v207
    %v209 = vlaneseq
    %v210 = vshrl.u32 %v209, 7
    %v211 = vsub.s32 %v208, %v210
    %v212 = vrot.slane %v204, %v211
    %v214 = vunpack.c.l.s4 1966171168
    %v215 = vunpack.c.0.s8 %v214
    %v216 = vlaneseq
    %v217 = vshrl.u32 %v216, 7
    %v218 = vsub.s32 %v215, %v217
    %v219 = vrot.slane %v205, %v218
    %v222 = vld [vmem:[%s4] sm:$0x1]
    %v223 = vadd.f32 %v212, %v222
    %v224 = vadd.f32 %v219, %v222
    %v227 = vlaneseq
    %v228 = vshrl.u32 %v227, 7
    %v229 = vsub.s32 0, %v228
    %v230 = vrot.slane %v223, %v229
    %v231 = vlaneseq
    %v232 = vshrl.u32 %v231, 7
    %v233 = vsub.s32 0, %v232
    %v234 = vrot.slane %v224, %v233
    %v237 = vadd.f32 %v111, %v230
    %v238 = vadd.f32 %v116, %v234
    %v239 = vtanh.pop %v237
    %v240 = vtanh.pop %v238
    %v241 = vld [vmem:[%s5] sm:$0x1]
    %v243 = vlaneseq
    %v244 = vshrl.u32 %v243, 7
    %v245 = vsub.s32 0, %v244
    %v246 = vrot.slane %v241, %v245
    %v248 = vmul.f32 %v239, %v246
    %v249 = vmul.f32 %v240, %v246
    %vm250 = vcmask 130048
    %v251 = vsel %vm250, %v248, 0.0
    %252 = vadd.xlane.f32.xlu0 %v251
    %v253 = vpop.xlane.xlu0 %252
    %v254 = vsel %vm250, %v249, 0.0
    %255 = vadd.xlane.f32.xlu0 %v254
    %v256 = vpop.xlane.xlu0 %255
    %v257 = vld [vmem:[#allocation2] sm:$0x1]
    %v259 = vlaneseq
    %v260 = vshrl.u32 %v259, 7
    %v261 = vsub.s32 0, %v260
    %v262 = vrot.slane %v257, %v261
    %v264 = vadd.f32 %v253, %v262
    %v265 = vadd.f32 %v256, %v262
    %vm266 = vcmask 7168
    %v267 = vsel %vm266, %v264, -inf
    %v268 = vrot.slane %v267, 4
    %v269 = vmax.f32 %v267, %v268
    %v270 = vrot.slane %v269, 2
    %v271 = vmax.f32 %v269, %v270
    %v272 = vrot.slane %v271, 1
    %v273 = vmax.f32 %v271, %v272
    %v274 = vsel %vm266, %v265, -inf
    %v275 = vrot.slane %v274, 4
    %v276 = vmax.f32 %v274, %v275
    %v277 = vrot.slane %v276, 2
    %v278 = vmax.f32 %v276, %v277
    %v279 = vrot.slane %v278, 1
    %v280 = vmax.f32 %v278, %v279
    %v281 = vsub.f32 %v264, %v273
    %v282 = vsub.f32 %v265, %v280
    %v283 = vmul.f32 %v281, 1.442695
    %v284 = vpow.pop %v283
    %v285 = vmul.f32 %v282, 1.442695
    %v286 = vpow.pop %v285
    %v287 = vsel %vm266, %v284, 0.0
    %v288 = vrot.slane %v287, 4
    %v289 = vadd.f32 %v287, %v288
    %v290 = vrot.slane %v289, 2
    %v291 = vadd.f32 %v289, %v290
    %v292 = vrot.slane %v291, 1
    %v293 = vadd.f32 %v291, %v292
    %v294 = vsel %vm266, %v286, 0.0
    %v295 = vrot.slane %v294, 4
    %v296 = vadd.f32 %v294, %v295
    %v297 = vrot.slane %v296, 2
    %v298 = vadd.f32 %v296, %v297
    %v299 = vrot.slane %v298, 1
    %v300 = vadd.f32 %v298, %v299
    %v301 = vrcp.pop %v293
    %v302 = vrcp.pop %v300
    %v303 = vmul.f32 %v293, %v301
    %v304 = vmul.f32 %v300, %v302
    %v305 = vsub.f32 2.0, %v303
    %v306 = vsub.f32 2.0, %v304
    %v307 = vmul.f32 %v301, %v305
    %v308 = vmul.f32 %v302, %v306
    %v309 = vmul.f32 %v284, %v307
    %v310 = vmul.f32 %v286, %v308
    %311 = vst.msk [vmem:[%s8] sm:$0xff] %vm266, %v309
    %312 = vst.msk [vmem:[%s8 + $0x8] sm:$0xff] %vm266, %v310
    %314 = vset.pattern.permute.xlu0 0
    %315 = vperm.xlu0 %314, %v309
    %v316 = vpop.permute.xlu0 %315
    %319 = vset.pattern.permute.xlu0 0
    %320 = vperm.xlu0 %319, %v310
    %v321 = vpop.permute.xlu0 %320
    %v323 = vmul.f32 %v31, %v316
    %v324 = vmul.f32 %v32, %v321
    %v325 = vsel %vm37, %v323, 0.0
    %v326 = vrot.slane %v325, 4
    %v327 = vadd.f32 %v325, %v326
    %v328 = vrot.slane %v327, 2
    %v329 = vadd.f32 %v327, %v328
    %v330 = vrot.slane %v329, 1
    %v331 = vadd.f32 %v329, %v330
    %v332 = vsel %vm37, %v324, 0.0
    %v333 = vrot.slane %v332, 4
    %v334 = vadd.f32 %v332, %v333
    %v335 = vrot.slane %v334, 2
    %v336 = vadd.f32 %v334, %v335
    %v337 = vrot.slane %v336, 1
    %v338 = vadd.f32 %v336, %v337
    %vm341 = vcmask 1041409
    %v342 = vsel %vm341, %v338, %v331
    %vm344 = vcmask 254976
    %345 = vst.msk [vmem:[#allocation3] sm:$0x3] %vm344, %v342
    // Predicated region
    $region30: #{tpu_custom_call.1} parent=1 // pred_check
      _
    $region31: #{tpu_custom_call.1} parent=1 // pred_check_branch
      %347 = sbr.rel (0) target = $region33
    $region32: #{tpu_custom_call.1} parent=1 // pred_region
      %s349 = ssub.s32 32, 32
      %350 = vsyncadd [#allocation4], %s349
      %s352 = sshll.u32 [#allocation3], 4
      %s353 = int_to_ptr.vmem [resolvable:$true] %s352
      %355 = dma.vmem_to_hbm [thread:$0]  %s353, 32, %s7, [#allocation4]
    $region33: #{tpu_custom_call.1} parent=1 // pred_fallthru
      _
    // Predicated region
    $region34: #{tpu_custom_call.1} parent=1 // pred_check
      _
    $region35: #{tpu_custom_call.1} parent=1 // pred_check_branch
      %357 = sbr.rel (0) target = $region37
    $region36: #{tpu_custom_call.1} parent=1 // pred_region
      _
    $region37: #{tpu_custom_call.1} parent=1 // pred_fallthru
      _
    // Predicated region
    $region38: #{tpu_custom_call.1} parent=1 // pred_check
      _
    $region39: #{tpu_custom_call.1} parent=1 // pred_check_branch
      %359 = sbr.rel (0) target = $region41
    $region40: #{tpu_custom_call.1} parent=1 // pred_region
      %360 = dma.done [#allocation4], 32
    $region41: #{tpu_custom_call.1} parent=1 // pred_fallthru
      _
    // Predicated region
    $region42: #{tpu_custom_call.1} parent=1 // pred_check
      _
    $region43: #{tpu_custom_call.1} parent=1 // pred_check_branch
      %362 = sbr.rel (0) target = $region45
    $region44: #{tpu_custom_call.1} parent=1 // pred_region
      _
    $region45: #{tpu_custom_call.1} parent=1 // pred_fallthru
      _
    %363 = vsyncpa [#allocation4], 1

</llo_original>
